<compile_context>
chip_gen: v7x
topology: tpu7x:2x2x1
jax: 0.10.0
libtpu: 0.0.40
codegen_flags: <defaults>
</compile_context>

<pallas_src>
import math
import functools

import jax
import jax.numpy as jnp
from jax.experimental import pallas as pl
from jax.experimental.pallas import tpu as pltpu

_LANE = 128


def _self_attention_kernel(x_ref, wqkv_ref, bqkv_ref, ctx_ref, attn_ref, *,
                           a_pad, compute_dtype):
    """One grid step: (Bt, S, E) x-tile -> (Bt, S, A_pad) ctx + (Bt, S, S) attn."""
    Bt, S, E = x_ref.shape

    # ---- Fused (pre-scaled) Q/K/V projection: one MXU matmul over all rows.
    # S is a multiple of 8, so this reshape is a free sublane-major merge.
    x2d = x_ref[...].reshape(Bt * S, E).astype(compute_dtype)            # (Bt*S, E)
    qkv = jnp.dot(x2d, wqkv_ref[...],
                  preferred_element_type=jnp.float32) + bqkv_ref[...]    # (Bt*S, 3*A_pad) f32
    qkv = qkv.reshape(Bt, S, 3 * a_pad)

    # Slices land exactly on 128-lane tile boundaries -> free layout views.
    q = qkv[:, :, 0 * a_pad:1 * a_pad].astype(compute_dtype)  # pre-scaled by 1/sqrt(A)
    k = qkv[:, :, 1 * a_pad:2 * a_pad].astype(compute_dtype)
    v = qkv[:, :, 2 * a_pad:3 * a_pad].astype(compute_dtype)

    # ---- scores = (Q/sqrt(A)) @ K^T: contract last dims, no explicit .T ----
    # Padded Q/K columns are exactly zero, so contracting over A_pad == over A.
    scores = jnp.einsum("bqd,bkd->bqk", q, k,
                        preferred_element_type=jnp.float32)              # (Bt, S, S) f32

    # ---- numerically stable softmax, kept in f32 ---------------------------
    m = jnp.max(scores, axis=-1, keepdims=True)
    e = jnp.exp(scores - m)
    # Exact reciprocal of the (Bt, S, 1) denominator (only Bt*S values, cheap)
    # so the returned attention rows are row-stochastic to f32 accuracy.
    attn = e * (1.0 / jnp.sum(e, axis=-1, keepdims=True))

    # ---- context = attn @ V (bf16 MXU operands, f32 accumulation) ----------
    ctx = jnp.einsum("bqk,bkd->bqd", attn.astype(compute_dtype), v,
                     preferred_element_type=jnp.float32)                 # (Bt, S, A_pad)

    ctx_ref[...] = ctx.astype(ctx_ref.dtype)      # lane-dense (A_pad % 128 == 0)
    attn_ref[...] = attn.astype(attn_ref.dtype)


def _tensorcores_per_device():
    """Best-effort count of TensorCores addressable by one Pallas program."""
    try:
        info = pltpu.get_tpu_info()
        for attr in ("num_cores", "core_count", "num_tensorcores",
                     "num_tensor_cores", "tensorcore_count"):
            n = getattr(info, attr, None)
            if isinstance(n, int) and n >= 1:
                return n
    except Exception:
        pass
    try:
        kind = jax.devices()[0].device_kind.lower()
    except Exception:
        return 1
    # v7x (and v4) expose 2 TensorCores per device (megacore); v5e/v6e expose 1.
    return 2 if any(tag in kind for tag in ("v7", "7x", "v4")) else 1


def _per_batch_vmem_bytes(S, E, A_pad, attn_itemsize):
    """Rough per-batch-element VMEM bytes for one grid step (upper bound)."""
    f32, bf16 = 4, 2
    io = 2 * (S * E * f32)              # x block, double-buffered
    io += 2 * (S * A_pad * f32)         # ctx block, double-buffered
    io += 2 * (S * S * attn_itemsize)   # attn block, double-buffered
    tmp = (S * 3 * A_pad * f32          # qkv f32
           + 3 * S * A_pad * bf16       # q/k/v bf16
           + 3 * S * S * f32            # scores / e / attn temporaries
           + S * A_pad * f32)           # ctx f32
    return io + tmp


def _choose_block_b(B, S, per_batch_bytes, target_rows, n_cores, vmem_budget):
    divisors = [d for d in range(B, 0, -1) if B % d == 0]
    # Largest divisor that (a) keeps the projection's row tile near target_rows
    # and (b) keeps the per-step VMEM working set inside the budget.
    block_b = 1
    for d in divisors:
        if (d * S <= max(target_rows, S)
                and d * per_batch_bytes <= max(vmem_budget, per_batch_bytes)):
            block_b = d
            break
    # Multi-TC chips (v7x): the "parallel" batch axis needs >= n_cores grid
    # steps so both TensorCores get work. Single-TC chips (v5e/v6e) keep the
    # biggest tile -- extra grid steps there are pure per-step overhead.
    if n_cores > 1:
        want_steps = min(n_cores, B)
        while B // block_b < want_steps and block_b > 1:
            block_b = next(d for d in divisors if d < block_b)
    return block_b


def self_attention(x, wq, bq, wk, bk, wv, bv, *, attention_dim,
                   compute_dtype=jnp.bfloat16, attn_dtype=jnp.float32,
                   target_rows=512, block_vmem_budget=12 * 2**20):
    """x: (B, S, E); wq/wk/wv: (E, A) (i.e. PyTorch weight.T); bq/bk/bv: (1, A).
    Returns (context (B, S, A) f32, attention_weights (B, S, S) attn_dtype)."""
    B, S, E = x.shape
    A = attention_dim
    A_pad = ((A + _LANE - 1) // _LANE) * _LANE
    scale = 1.0 / math.sqrt(A)

    def _pad_cols(w):
        pad = A_pad - w.shape[-1]
        return w if pad == 0 else jnp.pad(w, ((0, 0), (0, pad)))

    # Fused, lane-padded projection weights/biases; softmax scale folded into Q.
    wqkv = jnp.concatenate([_pad_cols(wq * scale), _pad_cols(wk), _pad_cols(wv)],
                           axis=1).astype(compute_dtype)                 # (E, 3*A_pad)
    bqkv = jnp.concatenate([_pad_cols(bq * scale), _pad_cols(bk), _pad_cols(bv)],
                           axis=1).astype(jnp.float32)                   # (1, 3*A_pad)

    attn_itemsize = jnp.dtype(attn_dtype).itemsize
    per_b = _per_batch_vmem_bytes(S, E, A_pad, attn_itemsize)
    n_cores = _tensorcores_per_device()
    block_b = _choose_block_b(B, S, per_b, target_rows, n_cores, block_vmem_budget)
    grid = (B // block_b,)

    # VMEM limit from a computed estimate (weights double-buffered + per-step).
    fixed = 2 * (E * 3 * A_pad * jnp.dtype(compute_dtype).itemsize + 3 * A_pad * 4)
    est = fixed + block_b * per_b
    vmem_limit = int(min(max(2 * est, 32 * 2**20), 48 * 2**20))

    kernel = functools.partial(_self_attention_kernel, a_pad=A_pad,
                               compute_dtype=compute_dtype)

    ctx_pad, attn = pl.pallas_call(
        kernel,
        out_shape=(
            jax.ShapeDtypeStruct((B, S, A_pad), jnp.float32),
            jax.ShapeDtypeStruct((B, S, S), attn_dtype),
        ),
        grid_spec=pltpu.PrefetchScalarGridSpec(
            num_scalar_prefetch=0,
            grid=grid,
            in_specs=[
                pl.BlockSpec((block_b, S, E), lambda b: (b, 0, 0)),      # x tile
                pl.BlockSpec((E, 3 * A_pad), lambda b: (0, 0)),          # fused W_qkv
                pl.BlockSpec((1, 3 * A_pad), lambda b: (0, 0)),          # fused b_qkv
            ],
            out_specs=[
                pl.BlockSpec((block_b, S, A_pad), lambda b: (b, 0, 0)),  # padded ctx
                pl.BlockSpec((block_b, S, S), lambda b: (b, 0, 0)),      # attn weights
            ],
        ),
        compiler_params=pltpu.CompilerParams(
            dimension_semantics=("parallel",),
            vmem_limit_bytes=vmem_limit,
        ),
    )(x, wqkv, bqkv)

    ctx = ctx_pad[..., :A] if A_pad != A else ctx_pad
    return ctx, attn


def _reference(x, wq, bq, wk, bk, wv, bv, attention_dim):
    q = x @ wq + bq
    k = x @ wk + bk
    v = x @ wv + bv
    scores = jnp.einsum("bsa,bta->bst", q, k) / math.sqrt(attention_dim)
    attn = jax.nn.softmax(scores, axis=-1)
    ctx = jnp.einsum("bst,bta->bsa", attn, v)
    return ctx, attn


if __name__ == "__main__":
    B, S, E, A = 4, 8, 32, 16  # batch, seq, embedding_dim, attention_dim

    key = jax.random.PRNGKey(0)
    kx, kq, kbq, kk, kbk, kv, kbv = jax.random.split(key, 7)

    # Deterministic parameter init (nn.Linear-style uniform bound 1/sqrt(fan_in)).
    bound = 1.0 / math.sqrt(E)
    x  = jax.random.normal(kx, (B, S, E), dtype=jnp.float32)
    wq = jax.random.uniform(kq,  (E, A), minval=-bound, maxval=bound, dtype=jnp.float32)
    bq = jax.random.uniform(kbq, (1, A), minval=-bound, maxval=bound, dtype=jnp.float32)
    wk = jax.random.uniform(kk,  (E, A), minval=-bound, maxval=bound, dtype=jnp.float32)
    bk = jax.random.uniform(kbk, (1, A), minval=-bound, maxval=bound, dtype=jnp.float32)
    wv = jax.random.uniform(kv,  (E, A), minval=-bound, maxval=bound, dtype=jnp.float32)
    bv = jax.random.uniform(kbv, (1, A), minval=-bound, maxval=bound, dtype=jnp.float32)

    ctx, attn = self_attention(x, wq, bq, wk, bk, wv, bv, attention_dim=A)
    jax.block_until_ready((ctx, attn))

    ctx_ref, attn_ref = _reference(x, wq, bq, wk, bk, wv, bv, A)
    # bf16 MXU operands (f32 accumulation) => bf16-level tolerance.
    assert ctx.shape == (B, S, A) and attn.shape == (B, S, S)
    assert jnp.allclose(ctx, ctx_ref, atol=3e-2, rtol=3e-2), "context mismatch"
    assert jnp.allclose(attn, attn_ref, atol=3e-2, rtol=3e-2), "attention mismatch"
    # Returned attention rows are row-stochastic (exact denominator reciprocal).
    assert jnp.allclose(jnp.sum(attn, axis=-1), 1.0, atol=1e-5), "rows not normalized"

    print("KERNEL_OK")
</pallas_src>

<mosaic_0001>
module attributes {stable_mosaic.version = 11 : i64} {
  func.func @_self_attention_kernel(%arg0: i32, %arg1: memref<4x8x32xf32, #tpu.memory_space<vmem>>, %arg2: memref<32x384xbf16, #tpu.memory_space<vmem>>, %arg3: memref<1x384xf32, #tpu.memory_space<vmem>>, %arg4: memref<4x8x128xf32, #tpu.memory_space<vmem>>, %arg5: memref<4x8x8xf32, #tpu.memory_space<vmem>>) attributes {dimension_semantics = [#tpu.dimension_semantics<parallel>], iteration_bounds = array<i64: 1>, scalar_prefetch = 0 : i64, scratch_operands = 0 : i64, tpu.core_type = #tpu.core_type<tc>, window_params = [{transform_indices = @transform_0, window_bounds = array<i64: 4, 8, 32>}, {pipeline_mode = #tpu.pipeline_mode<synchronous>, transform_indices = @transform_1, window_bounds = array<i64: 32, 384>}, {pipeline_mode = #tpu.pipeline_mode<synchronous>, transform_indices = @transform_2, window_bounds = array<i64: 1, 384>}, {transform_indices = @transform_3, window_bounds = array<i64: 4, 8, 128>}, {transform_indices = @transform_4, window_bounds = array<i64: 4, 8, 8>}]} {
    %c0 = arith.constant 0 : index
    %c0_0 = arith.constant 0 : index
    %c0_1 = arith.constant 0 : index
    %0 = vector.load %arg1[%c0, %c0_0, %c0_1] : memref<4x8x32xf32, #tpu.memory_space<vmem>>, vector<4x8x32xf32>
    %1 = vector.shape_cast %0 : vector<4x8x32xf32> to vector<32x32xf32>
    %2 = arith.truncf %1 : vector<32x32xf32> to vector<32x32xbf16>
    %c0_2 = arith.constant 0 : index
    %c0_3 = arith.constant 0 : index
    %3 = vector.load %arg2[%c0_2, %c0_3] : memref<32x384xbf16, #tpu.memory_space<vmem>>, vector<32x384xbf16>
    %cst = arith.constant dense<0.000000e+00> : vector<32x384xf32>
    %4 = tpu.matmul %2, %3, %cst {dimension_numbers = #tpu.dot_dimension_numbers<[1], [0], [0], [1], [0, 0, 1, 1], [], []>} : vector<32x32xbf16>, vector<32x384xbf16>, vector<32x384xf32> -> vector<32x384xf32>
    %c0_4 = arith.constant 0 : index
    %c0_5 = arith.constant 0 : index
    %5 = vector.load %arg3[%c0_4, %c0_5] : memref<1x384xf32, #tpu.memory_space<vmem>>, vector<1x384xf32>
    %6 = vector.broadcast %5 : vector<1x384xf32> to vector<32x384xf32>
    %7 = arith.addf %4, %6 : vector<32x384xf32>
    %8 = vector.shape_cast %7 : vector<32x384xf32> to vector<4x8x384xf32>
    %9 = vector.extract_strided_slice %8 {offsets = [0, 0, 0], sizes = [4, 8, 128], strides = [1, 1, 1]} : vector<4x8x384xf32> to vector<4x8x128xf32>
    %10 = arith.truncf %9 : vector<4x8x128xf32> to vector<4x8x128xbf16>
    %11 = vector.extract_strided_slice %8 {offsets = [0, 0, 128], sizes = [4, 8, 128], strides = [1, 1, 1]} : vector<4x8x384xf32> to vector<4x8x128xf32>
    %12 = arith.truncf %11 : vector<4x8x128xf32> to vector<4x8x128xbf16>
    %13 = vector.extract_strided_slice %8 {offsets = [0, 0, 256], sizes = [4, 8, 128], strides = [1, 1, 1]} : vector<4x8x384xf32> to vector<4x8x128xf32>
    %14 = arith.truncf %13 : vector<4x8x128xf32> to vector<4x8x128xbf16>
    "tpu.trace_start"() <{level = 10 : i32, message = "bqd,bkd->bqk"}> : () -> ()
    %cst_6 = arith.constant dense<0.000000e+00> : vector<4x8x8xf32>
    %15 = tpu.matmul %10, %12, %cst_6 {dimension_numbers = #tpu.dot_dimension_numbers<[2], [2], [1], [1], [0, 0, 0, 1, 1, 1], [0], [0]>} : vector<4x8x128xbf16>, vector<4x8x128xbf16>, vector<4x8x8xf32> -> vector<4x8x8xf32>
    "tpu.trace_stop"() : () -> ()
    %cst_7 = arith.constant dense<0xFF800000> : vector<4x8xf32>
    %16 = vector.multi_reduction <maximumf>, %15, %cst_7 [2] : vector<4x8x8xf32> to vector<4x8xf32>
    %17 = vector.shape_cast %16 : vector<4x8xf32> to vector<4x8x1xf32>
    %18 = vector.broadcast %17 : vector<4x8x1xf32> to vector<4x8x8xf32>
    %19 = arith.subf %15, %18 : vector<4x8x8xf32>
    %20 = math.exp %19 : vector<4x8x8xf32>
    %cst_8 = arith.constant dense<0.000000e+00> : vector<4x8xf32>
    %21 = vector.multi_reduction <add>, %20, %cst_8 [2] : vector<4x8x8xf32> to vector<4x8xf32>
    %22 = vector.shape_cast %21 : vector<4x8xf32> to vector<4x8x1xf32>
    %cst_9 = arith.constant 1.000000e+00 : f32
    %23 = vector.broadcast %cst_9 : f32 to vector<4x8x1xf32>
    %24 = arith.divf %23, %22 : vector<4x8x1xf32>
    %25 = vector.broadcast %24 : vector<4x8x1xf32> to vector<4x8x8xf32>
    %26 = arith.mulf %20, %25 : vector<4x8x8xf32>
    %27 = arith.truncf %26 : vector<4x8x8xf32> to vector<4x8x8xbf16>
    "tpu.trace_start"() <{level = 10 : i32, message = "bqk,bkd->bqd"}> : () -> ()
    %cst_10 = arith.constant dense<0.000000e+00> : vector<4x8x128xf32>
    %28 = tpu.matmul %27, %14, %cst_10 {dimension_numbers = #tpu.dot_dimension_numbers<[2], [1], [1], [2], [0, 0, 0, 1, 1, 2], [0], [0]>} : vector<4x8x8xbf16>, vector<4x8x128xbf16>, vector<4x8x128xf32> -> vector<4x8x128xf32>
    "tpu.trace_stop"() : () -> ()
    %c0_11 = arith.constant 0 : index
    %c0_12 = arith.constant 0 : index
    %c0_13 = arith.constant 0 : index
    %29 = vector.load %arg4[%c0_11, %c0_12, %c0_13] : memref<4x8x128xf32, #tpu.memory_space<vmem>>, vector<4x8x128xf32>
    tpu.vector_store %arg4[%c0_11, %c0_12, %c0_13], %28 {strides = array<i32>} : memref<4x8x128xf32, #tpu.memory_space<vmem>>, vector<4x8x128xf32>,
    %c0_14 = arith.constant 0 : index
    %c0_15 = arith.constant 0 : index
    %c0_16 = arith.constant 0 : index
    %30 = vector.load %arg5[%c0_14, %c0_15, %c0_16] : memref<4x8x8xf32, #tpu.memory_space<vmem>>, vector<4x8x8xf32>
    tpu.vector_store %arg5[%c0_14, %c0_15, %c0_16], %26 {strides = array<i32>} : memref<4x8x8xf32, #tpu.memory_space<vmem>>, vector<4x8x8xf32>,
    return
  }
  func.func @transform_0(%arg0: i32) -> (i32, i32, i32) {
    %c0_i32 = arith.constant 0 : i32
    %c0_i32_0 = arith.constant 0 : i32
    %c0_i32_1 = arith.constant 0 : i32
    return %arg0, %c0_i32, %c0_i32_0 : i32, i32, i32
  }
  func.func @transform_1(%arg0: i32) -> (i32, i32) {
    %c0_i32 = arith.constant 0 : i32
    %c0_i32_0 = arith.constant 0 : i32
    %c0_i32_1 = arith.constant 0 : i32
    return %c0_i32, %c0_i32_0 : i32, i32
  }
  func.func @transform_2(%arg0: i32) -> (i32, i32) {
    %c0_i32 = arith.constant 0 : i32
    %c0_i32_0 = arith.constant 0 : i32
    %c0_i32_1 = arith.constant 0 : i32
    return %c0_i32, %c0_i32_0 : i32, i32
  }
  func.func @transform_3(%arg0: i32) -> (i32, i32, i32) {
    %c0_i32 = arith.constant 0 : i32
    %c0_i32_0 = arith.constant 0 : i32
    %c0_i32_1 = arith.constant 0 : i32
    return %arg0, %c0_i32, %c0_i32_0 : i32, i32, i32
  }
  func.func @transform_4(%arg0: i32) -> (i32, i32, i32) {
    %c0_i32 = arith.constant 0 : i32
    %c0_i32_0 = arith.constant 0 : i32
    %c0_i32_1 = arith.constant 0 : i32
    return %arg0, %c0_i32, %c0_i32_0 : i32, i32, i32
  }
}

</mosaic_0001>

<llo_original>
// kernel: tpu_custom_call.1
$region0: #{tpu_custom_call.1}
  #allocation0 [shape = 'u32[]', space=smem, size = 0x4, offset = 0x4, fixed_abs, tag = 'smem constant byte address 0x4 - core index']
  #allocation1 [shape = 'u32[144,128]{1,0:T(1,128)}', space=vmem, size = 0x12000, scoped, tag = 'internal scratch']
  %s0 = inlined_call_operand.hbm [shape: f32[4,8,32], index: 0, kind: input, shape index: {}]
  %s1 = inlined_call_operand.hbm [shape: bf16[32,384], index: 1, kind: input, shape index: {}]
  %s2 = inlined_call_operand.vmem [shape: f32[1,384], index: 2, kind: input, shape index: {}]
  %s3 = inlined_call_operand.hbm [shape: f32[4,8,128], index: 3, kind: output, shape index: {0}]
  %s4 = inlined_call_operand.hbm [shape: f32[4,8,8], index: 4, kind: output, shape index: {1}]
  %5 = xla_tuple %s3, %s4
  %s6 = sld [smem:[#allocation0]]
  $region38: #{tpu_custom_call.1} parent=0
    _
  %s8 = ssub.s32 1, %s6
  %s9 = scalar_select 0, %s8, %s6
  $region1: #{tpu_custom_call.1} parent=0
    #allocation2 [shape = 'u8[16384]{0}', space=vmem, size = 0x4000, scoped, tag = 'input window, operand 0, single buffered']
    #allocation3 [shape = 's32[1]{0}', space=sflag, size = 0x4, scoped, tag = 'scoped memory for tpu_custom_call.1']
    #allocation4 [shape = 's32[1]{0}', space=sflag, size = 0x4, scoped, tag = 'scoped memory for tpu_custom_call.1']
    #allocation5 [shape = 'u8[24576]{0}', space=vmem, size = 0x6000, scoped, tag = 'input window, operand 1, single buffered']
    #allocation6 [shape = 's32[1]{0}', space=sflag, size = 0x4, scoped, tag = 'scoped memory for tpu_custom_call.1']
    #allocation7 [shape = 'u8[16384]{0}', space=vmem, size = 0x4000, scoped, tag = 'output window, operand 0, single buffered']
    #allocation8 [shape = 'u8[16384]{0}', space=vmem, size = 0x4000, scoped, tag = 'output window, operand 1, single buffered']
    #allocation9 [shape = 's32[1]{0}', space=sflag, size = 0x4, scoped, tag = 'scoped memory for tpu_custom_call.1']
    %10 = vsyncpa [#allocation3], 0
    %11 = vsyncpa [#allocation6], 0
    %12 = vsyncpa [#allocation4], 0
    %13 = vsyncpa [#allocation9], 0
    // Predicated region
    $region2: #{tpu_custom_call.1} parent=1 // pred_check
      _
    $region3: #{tpu_custom_call.1} parent=1 // pred_check_branch
      %15 = sbr.rel (0) target = $region5
    $region4: #{tpu_custom_call.1} parent=1 // pred_region
      %s17 = ssub.s32 512, 512
      %18 = vsyncadd [#allocation3], %s17
      %s19 = sshll.u32 [#allocation2], 4
      %s20 = int_to_ptr.vmem [resolvable:$true] %s19
      %25 = dma.hbm_to_vmem [thread:$0]  %s0, 512, %s20, [#allocation3], 128, 128, 8
    $region5: #{tpu_custom_call.1} parent=1 // pred_fallthru
      _
    // Predicated region
    $region6: #{tpu_custom_call.1} parent=1 // pred_check
      _
    $region7: #{tpu_custom_call.1} parent=1 // pred_check_branch
      %27 = sbr.rel (0) target = $region9
    $region8: #{tpu_custom_call.1} parent=1 // pred_region
      %s29 = ssub.s32 768, 768
      %30 = vsyncadd [#allocation6], %s29
      %s31 = sshll.u32 [#allocation5], 4
      %s32 = int_to_ptr.vmem [resolvable:$true] %s31
      %37 = dma.hbm_to_vmem [thread:$0]  %s1, 768, %s32, [#allocation6], 192, 192, 12
    $region9: #{tpu_custom_call.1} parent=1 // pred_fallthru
      _
    // Predicated region
    $region10: #{tpu_custom_call.1} parent=1 // pred_check
      _
    $region11: #{tpu_custom_call.1} parent=1 // pred_check_branch
      %39 = sbr.rel (0) target = $region13
    $region12: #{tpu_custom_call.1} parent=1 // pred_region
      _
    $region13: #{tpu_custom_call.1} parent=1 // pred_fallthru
      _
    // Predicated region
    $region14: #{tpu_custom_call.1} parent=1 // pred_check
      _
    $region15: #{tpu_custom_call.1} parent=1 // pred_check_branch
      %41 = sbr.rel (0) target = $region17
    $region16: #{tpu_custom_call.1} parent=1 // pred_region
      %42 = dma.done [#allocation3], 512
    $region17: #{tpu_custom_call.1} parent=1 // pred_fallthru
      _
    // Predicated region
    $region18: #{tpu_custom_call.1} parent=1 // pred_check
      _
    $region19: #{tpu_custom_call.1} parent=1 // pred_check_branch
      %44 = sbr.rel (0) target = $region21
    $region20: #{tpu_custom_call.1} parent=1 // pred_region
      %45 = dma.done [#allocation6], 768
    $region21: #{tpu_custom_call.1} parent=1 // pred_fallthru
      _
    %v47 = vld [vmem:[#allocation2] sm:$0xff]
    %v48 = vld [vmem:[#allocation2 + $0x8] sm:$0xff]
    %v49 = vld [vmem:[#allocation2 + $0x10] sm:$0xff]
    %v50 = vld [vmem:[#allocation2 + $0x18] sm:$0xff]
    %v51 = vpack.c.bf16 %v48, %v47
    %v52 = vpack.c.bf16 %v50, %v49
    %v53 = vld [vmem:[#allocation5] sm:$0xff]
    %v54 = vld [vmem:[#allocation5 + $0x8] sm:$0xf]
    %v55 = vld [vmem:[#allocation5 + $0xc] sm:$0xff]
    %v56 = vld [vmem:[#allocation5 + $0x14] sm:$0xf]
    %v57 = vld [vmem:[#allocation5 + $0x18] sm:$0xff]
    %v58 = vld [vmem:[#allocation5 + $0x20] sm:$0xf]
    %v59 = vld [vmem:[#allocation5 + $0x24] sm:$0xff]
    %v60 = vld [vmem:[#allocation5 + $0x2c] sm:$0xf]
    %v61 = vld [vmem:[%s2] sm:$0x7]
    %v63 = vlaneseq
    %v64 = vshrl.u32 %v63, 7
    %v65 = vsub.s32 0, %v64
    %v66 = vrot.slane %v61, %v65
    %v67 = vlaneseq
    %v68 = vshrl.u32 %v67, 7
    %v69 = vsub.s32 1, %v68
    %v70 = vrot.slane %v61, %v69
    %v71 = vlaneseq
    %v72 = vshrl.u32 %v71, 7
    %v73 = vsub.s32 2, %v72
    %v74 = vrot.slane %v61, %v73
    %v86 = vunpack.c.l.b16 %v53
    %v87 = vunpack.c.h.b16 %v53
    %v88 = vunpack.c.l.b16 %v54
    %v89 = vunpack.c.l.b16 %v55
    %v90 = vunpack.c.h.b16 %v55
    %v91 = vunpack.c.l.b16 %v56
    %v92 = vunpack.c.l.b16 %v57
    %v93 = vunpack.c.h.b16 %v57
    %v94 = vunpack.c.l.b16 %v58
    %v95 = vunpack.c.l.b16 %v59
    %v96 = vunpack.c.h.b16 %v59
    %v97 = vunpack.c.l.b16 %v60
    %v98 = vpack.c.b16 %v89, %v86
    %v99 = vpack.c.b16 %v90, %v87
    %v100 = vpack.c.b16 %v91, %v88
    %v101 = vpack.c.b16 %v95, %v92
    %v102 = vpack.c.b16 %v96, %v93
    %v103 = vpack.c.b16 %v97, %v94
    %vm110 = vcmask 261120
    %v112 = vsel %vm110, %v51, 0
    %v115 = vsel %vm110, %v52, 0
    %117 = vmatprep.subr.bf16.mxu0 %v99
    %118 = vmatpush1.bf16.msra.mxu0 %v98
    %119 = vmatprep.subr.bf16.mxu0 %v102
    %120 = vmatpush1.bf16.msra.mxu0 %v101
    %121 = vmatprep.subr.bf16.mxu0 0
    %122 = vmatpush1.bf16.msra.mxu0 0
    %123 = vmatprep.subr.bf16.mxu0 0
    %124 = vmatpush1.bf16.msra.mxu0 0
    %125 = vmatprep.subr.bf16.mxu0 0
    %126 = vmatpush1.bf16.msra.mxu0 0
    %127 = vmatprep.subr.bf16.mxu0 0
    %128 = vmatpush1.bf16.msra.mxu0 0
    %129 = vmatprep.subr.bf16.mxu0 0
    %130 = vmatpush1.bf16.msra.mxu0 0
    %131 = vmatprep.subr.bf16.mxu0 0
    %132 = vmatpush1.bf16.msra.mxu0 0
    %133 = vmatprep.subr.bf16.mxu0 0
    %134 = vmatpush1.bf16.msra.mxu0 0
    %135 = vmatprep.subr.bf16.mxu0 0
    %136 = vmatpush1.bf16.msra.mxu0 0
    %137 = vmatprep.subr.bf16.mxu0 0
    %138 = vmatpush1.bf16.msra.mxu0 0
    %139 = vmatprep.subr.bf16.mxu0 0
    %140 = vmatpush1.bf16.msra.mxu0 0
    %141 = vmatprep.subr.bf16.mxu0 0
    %142 = vmatpush1.bf16.msra.mxu0 0
    %143 = vmatprep.subr.bf16.mxu0 0
    %144 = vmatpush1.bf16.msra.mxu0 0
    %145 = vmatprep.subr.bf16.mxu0 0
    %146 = vmatpush1.bf16.msra.mxu0 0
    %147 = vmatprep.subr.bf16.mxu0 0
    %148 = vmatpush1.bf16.msra.mxu0 0
    %149 = vmatprep.mubr.bf16.mxu0 0
    %150 = vmatmul.mubr.bf16.gmra.mrb[0].mxu0 %v112
    %v151 = vpop.f32.mrb[0].mxu0
    %v152 = vadd.f32 %v66, %v151
    %v153 = vpop.f32.mrb[0].mxu0
    %v154 = vadd.f32 %v70, %v153
    %v155 = vpop.f32.mrb[0].mxu0
    %v156 = vadd.f32 %v66, %v155
    %v157 = vpop.f32.mrb[0].mxu0
    %v158 = vadd.f32 %v70, %v157
    %159 = vmatprep.mubr.bf16.mxu0 0
    %160 = vmatmul.mubr.bf16.gmra.mrb[0].mxu0 %v115
    %v161 = vpop.f32.mrb[0].mxu0
    %v162 = vadd.f32 %v66, %v161
    %v163 = vpop.f32.mrb[0].mxu0
    %v164 = vadd.f32 %v70, %v163
    %v165 = vpop.f32.mrb[0].mxu0
    %v166 = vadd.f32 %v66, %v165
    %v167 = vpop.f32.mrb[0].mxu0
    %v168 = vadd.f32 %v70, %v167
    %169 = vdwg.mxu0
    %170 = vmatprep.subr.bf16.mxu0 0
    %171 = vmatpush1.bf16.msra.mxu0 %v100
    %172 = vmatprep.subr.bf16.mxu0 0
    %173 = vmatpush1.bf16.msra.mxu0 %v103
    %174 = vmatprep.subr.bf16.mxu0 0
    %175 = vmatpush1.bf16.msra.mxu0 0
    %176 = vmatprep.subr.bf16.mxu0 0
    %177 = vmatpush1.bf16.msra.mxu0 0
    %178 = vmatprep.subr.bf16.mxu0 0
    %179 = vmatpush1.bf16.msra.mxu0 0
    %180 = vmatprep.subr.bf16.mxu0 0
    %181 = vmatpush1.bf16.msra.mxu0 0
    %182 = vmatprep.subr.bf16.mxu0 0
    %183 = vmatpush1.bf16.msra.mxu0 0
    %184 = vmatprep.subr.bf16.mxu0 0
    %185 = vmatpush1.bf16.msra.mxu0 0
    %186 = vmatprep.subr.bf16.mxu0 0
    %187 = vmatpush1.bf16.msra.mxu0 0
    %188 = vmatprep.subr.bf16.mxu0 0
    %189 = vmatpush1.bf16.msra.mxu0 0
    %190 = vmatprep.subr.bf16.mxu0 0
    %191 = vmatpush1.bf16.msra.mxu0 0
    %192 = vmatprep.subr.bf16.mxu0 0
    %193 = vmatpush1.bf16.msra.mxu0 0
    %194 = vmatprep.subr.bf16.mxu0 0
    %195 = vmatpush1.bf16.msra.mxu0 0
    %196 = vmatprep.subr.bf16.mxu0 0
    %197 = vmatpush1.bf16.msra.mxu0 0
    %198 = vmatprep.subr.bf16.mxu0 0
    %199 = vmatpush1.bf16.msra.mxu0 0
    %200 = vmatprep.subr.bf16.mxu0 0
    %201 = vmatpush1.bf16.msra.mxu0 0
    %202 = vmatprep.mubr.bf16.mxu0 0
    %203 = vmatmul.mubr.bf16.gmra.mrb[0].mxu0 %v112
    %v204 = vpop.f32.mrb[0].mxu0
    %v205 = vadd.f32 %v74, %v204
    %v206 = vpop.f32.mrb[0].mxu0
    %v207 = vpop.f32.mrb[0].mxu0
    %v208 = vadd.f32 %v74, %v207
    %v209 = vpop.f32.mrb[0].mxu0
    %210 = vmatprep.mubr.bf16.mxu0 0
    %211 = vmatmul.mubr.bf16.gmra.mrb[0].mxu0 %v115
    %v212 = vpop.f32.mrb[0].mxu0
    %v213 = vadd.f32 %v74, %v212
    %v214 = vpop.f32.mrb[0].mxu0
    %v215 = vpop.f32.mrb[0].mxu0
    %v216 = vadd.f32 %v74, %v215
    %v217 = vpop.f32.mrb[0].mxu0
    %218 = vdwg.mxu0
    %v219 = vpack.c.bf16 %v152, %v152
    %v220 = vpack.c.bf16 %v156, %v156
    %v221 = vpack.c.bf16 %v162, %v162
    %v222 = vpack.c.bf16 %v166, %v166
    %v223 = vpack.c.bf16 %v154, %v154
    %v224 = vpack.c.bf16 %v158, %v158
    %v225 = vpack.c.bf16 %v164, %v164
    %v226 = vpack.c.bf16 %v168, %v168
    %v227 = vpack.c.bf16 %v205, %v205
    %v228 = vpack.c.bf16 %v208, %v208
    %v229 = vpack.c.bf16 %v213, %v213
    %v230 = vpack.c.bf16 %v216, %v216
    %231 = vmatprep.subr.bf16.mxu0 0
    %232 = vmatpush1.bf16.xpose.msra.mxu0 %v223
    %233 = vmatprep.subr.bf16.mxu0 0
    %234 = vmatpush1.bf16.xpose.msra.mxu0 0
    %235 = vmatprep.subr.bf16.mxu0 0
    %236 = vmatpush1.bf16.xpose.msra.mxu0 0
    %237 = vmatprep.subr.bf16.mxu0 0
    %238 = vmatpush1.bf16.xpose.msra.mxu0 0
    %239 = vmatprep.subr.bf16.mxu0 0
    %240 = vmatpush1.bf16.xpose.msra.mxu0 0
    %241 = vmatprep.subr.bf16.mxu0 0
    %242 = vmatpush1.bf16.xpose.msra.mxu0 0
    %243 = vmatprep.subr.bf16.mxu0 0
    %244 = vmatpush1.bf16.xpose.msra.mxu0 0
    %245 = vmatprep.subr.bf16.mxu0 0
    %246 = vmatpush1.bf16.xpose.msra.mxu0 0
    %247 = vmatprep.subr.bf16.mxu0 0
    %248 = vmatpush1.bf16.xpose.msra.mxu0 0
    %249 = vmatprep.subr.bf16.mxu0 0
    %250 = vmatpush1.bf16.xpose.msra.mxu0 0
    %251 = vmatprep.subr.bf16.mxu0 0
    %252 = vmatpush1.bf16.xpose.msra.mxu0 0
    %253 = vmatprep.subr.bf16.mxu0 0
    %254 = vmatpush1.bf16.xpose.msra.mxu0 0
    %255 = vmatprep.subr.bf16.mxu0 0
    %256 = vmatpush1.bf16.xpose.msra.mxu0 0
    %257 = vmatprep.subr.bf16.mxu0 0
    %258 = vmatpush1.bf16.xpose.msra.mxu0 0
    %259 = vmatprep.subr.bf16.mxu0 0
    %260 = vmatpush1.bf16.xpose.msra.mxu0 0
    %261 = vmatprep.subr.bf16.mxu0 0
    %262 = vmatpush1.bf16.xpose.msra.mxu0 0
    %263 = vmatprep.mubr.bf16.mxu0 0
    %264 = vmatmul.mubr.bf16.gmra.mrb[0].mxu0 %v219
    %v265 = vpop.f32.mrb[0].mxu0
    %v266 = vadd.f32 0.0, %v265
    %v267 = vpop.f32.mrb[0].mxu0
    %v268 = vpop.f32.mrb[0].mxu0
    %v269 = vpop.f32.mrb[0].mxu0
    %270 = vdwg.mxu0
    %271 = vmatprep.subr.bf16.mxu0 0
    %272 = vmatpush1.bf16.xpose.msra.mxu0 %v224
    %273 = vmatprep.subr.bf16.mxu0 0
    %274 = vmatpush1.bf16.xpose.msra.mxu0 0
    %275 = vmatprep.subr.bf16.mxu0 0
    %276 = vmatpush1.bf16.xpose.msra.mxu0 0
    %277 = vmatprep.subr.bf16.mxu0 0
    %278 = vmatpush1.bf16.xpose.msra.mxu0 0
    %279 = vmatprep.subr.bf16.mxu0 0
    %280 = vmatpush1.bf16.xpose.msra.mxu0 0
    %281 = vmatprep.subr.bf16.mxu0 0
    %282 = vmatpush1.bf16.xpose.msra.mxu0 0
    %283 = vmatprep.subr.bf16.mxu0 0
    %284 = vmatpush1.bf16.xpose.msra.mxu0 0
    %285 = vmatprep.subr.bf16.mxu0 0
    %286 = vmatpush1.bf16.xpose.msra.mxu0 0
    %287 = vmatprep.subr.bf16.mxu0 0
    %288 = vmatpush1.bf16.xpose.msra.mxu0 0
    %289 = vmatprep.subr.bf16.mxu0 0
    %290 = vmatpush1.bf16.xpose.msra.mxu0 0
    %291 = vmatprep.subr.bf16.mxu0 0
    %292 = vmatpush1.bf16.xpose.msra.mxu0 0
    %293 = vmatprep.subr.bf16.mxu0 0
    %294 = vmatpush1.bf16.xpose.msra.mxu0 0
    %295 = vmatprep.subr.bf16.mxu0 0
    %296 = vmatpush1.bf16.xpose.msra.mxu0 0
    %297 = vmatprep.subr.bf16.mxu0 0
    %298 = vmatpush1.bf16.xpose.msra.mxu0 0
    %299 = vmatprep.subr.bf16.mxu0 0
    %300 = vmatpush1.bf16.xpose.msra.mxu0 0
    %301 = vmatprep.subr.bf16.mxu0 0
    %302 = vmatpush1.bf16.xpose.msra.mxu0 0
    %303 = vmatprep.mubr.bf16.mxu0 0
    %304 = vmatmul.mubr.bf16.gmra.mrb[0].mxu0 %v220
    %v305 = vpop.f32.mrb[0].mxu0
    %v306 = vadd.f32 0.0, %v305
    %v307 = vpop.f32.mrb[0].mxu0
    %v308 = vpop.f32.mrb[0].mxu0
    %v309 = vpop.f32.mrb[0].mxu0
    %310 = vdwg.mxu0
    %311 = vmatprep.subr.bf16.mxu0 0
    %312 = vmatpush1.bf16.xpose.msra.mxu0 %v225
    %313 = vmatprep.subr.bf16.mxu0 0
    %314 = vmatpush1.bf16.xpose.msra.mxu0 0
    %315 = vmatprep.subr.bf16.mxu0 0
    %316 = vmatpush1.bf16.xpose.msra.mxu0 0
    %317 = vmatprep.subr.bf16.mxu0 0
    %318 = vmatpush1.bf16.xpose.msra.mxu0 0
    %319 = vmatprep.subr.bf16.mxu0 0
    %320 = vmatpush1.bf16.xpose.msra.mxu0 0
    %321 = vmatprep.subr.bf16.mxu0 0
    %322 = vmatpush1.bf16.xpose.msra.mxu0 0
    %323 = vmatprep.subr.bf16.mxu0 0
    %324 = vmatpush1.bf16.xpose.msra.mxu0 0
    %325 = vmatprep.subr.bf16.mxu0 0
    %326 = vmatpush1.bf16.xpose.msra.mxu0 0
    %327 = vmatprep.subr.bf16.mxu0 0
    %328 = vmatpush1.bf16.xpose.msra.mxu0 0
    %329 = vmatprep.subr.bf16.mxu0 0
    %330 = vmatpush1.bf16.xpose.msra.mxu0 0
    %331 = vmatprep.subr.bf16.mxu0 0
    %332 = vmatpush1.bf16.xpose.msra.mxu0 0
    %333 = vmatprep.subr.bf16.mxu0 0
    %334 = vmatpush1.bf16.xpose.msra.mxu0 0
    %335 = vmatprep.subr.bf16.mxu0 0
    %336 = vmatpush1.bf16.xpose.msra.mxu0 0
    %337 = vmatprep.subr.bf16.mxu0 0
    %338 = vmatpush1.bf16.xpose.msra.mxu0 0
    %339 = vmatprep.subr.bf16.mxu0 0
    %340 = vmatpush1.bf16.xpose.msra.mxu0 0
    %341 = vmatprep.subr.bf16.mxu0 0
    %342 = vmatpush1.bf16.xpose.msra.mxu0 0
    %343 = vmatprep.mubr.bf16.mxu0 0
    %344 = vmatmul.mubr.bf16.gmra.mrb[0].mxu0 %v221
    %v345 = vpop.f32.mrb[0].mxu0
    %v346 = vadd.f32 0.0, %v345
    %v347 = vpop.f32.mrb[0].mxu0
    %v348 = vpop.f32.mrb[0].mxu0
    %v349 = vpop.f32.mrb[0].mxu0
    %350 = vdwg.mxu0
    %351 = vmatprep.subr.bf16.mxu0 0
    %352 = vmatpush1.bf16.xpose.msra.mxu0 %v226
    %353 = vmatprep.subr.bf16.mxu0 0
    %354 = vmatpush1.bf16.xpose.msra.mxu0 0
    %355 = vmatprep.subr.bf16.mxu0 0
    %356 = vmatpush1.bf16.xpose.msra.mxu0 0
    %357 = vmatprep.subr.bf16.mxu0 0
    %358 = vmatpush1.bf16.xpose.msra.mxu0 0
    %359 = vmatprep.subr.bf16.mxu0 0
    %360 = vmatpush1.bf16.xpose.msra.mxu0 0
    %361 = vmatprep.subr.bf16.mxu0 0
    %362 = vmatpush1.bf16.xpose.msra.mxu0 0
    %363 = vmatprep.subr.bf16.mxu0 0
    %364 = vmatpush1.bf16.xpose.msra.mxu0 0
    %365 = vmatprep.subr.bf16.mxu0 0
    %366 = vmatpush1.bf16.xpose.msra.mxu0 0
    %367 = vmatprep.subr.bf16.mxu0 0
    %368 = vmatpush1.bf16.xpose.msra.mxu0 0
    %369 = vmatprep.subr.bf16.mxu0 0
    %370 = vmatpush1.bf16.xpose.msra.mxu0 0
    %371 = vmatprep.subr.bf16.mxu0 0
    %372 = vmatpush1.bf16.xpose.msra.mxu0 0
    %373 = vmatprep.subr.bf16.mxu0 0
    %374 = vmatpush1.bf16.xpose.msra.mxu0 0
    %375 = vmatprep.subr.bf16.mxu0 0
    %376 = vmatpush1.bf16.xpose.msra.mxu0 0
    %377 = vmatprep.subr.bf16.mxu0 0
    %378 = vmatpush1.bf16.xpose.msra.mxu0 0
    %379 = vmatprep.subr.bf16.mxu0 0
    %380 = vmatpush1.bf16.xpose.msra.mxu0 0
    %381 = vmatprep.subr.bf16.mxu0 0
    %382 = vmatpush1.bf16.xpose.msra.mxu0 0
    %383 = vmatprep.mubr.bf16.mxu0 0
    %384 = vmatmul.mubr.bf16.gmra.mrb[0].mxu0 %v222
    %v385 = vpop.f32.mrb[0].mxu0
    %v386 = vadd.f32 0.0, %v385
    %v387 = vpop.f32.mrb[0].mxu0
    %v388 = vpop.f32.mrb[0].mxu0
    %v389 = vpop.f32.mrb[0].mxu0
    %390 = vdwg.mxu0
    %vm391 = vcmask 64512
    %v392 = vsel %vm391, %v266, -inf
    %393 = vmax.xlane.f32.xlu0 %v392
    %v394 = vpop.xlane.xlu0 %393
    %v395 = vsel %vm391, %v306, -inf
    %396 = vmax.xlane.f32.xlu0 %v395
    %v397 = vpop.xlane.xlu0 %396
    %v398 = vsel %vm391, %v346, -inf
    %399 = vmax.xlane.f32.xlu0 %v398
    %v400 = vpop.xlane.xlu0 %399
    %v401 = vsel %vm391, %v386, -inf
    %402 = vmax.xlane.f32.xlu0 %v401
    %v403 = vpop.xlane.xlu0 %402
    %v404 = vsub.f32 %v266, %v394
    %v405 = vsub.f32 %v306, %v397
    %v406 = vsub.f32 %v346, %v400
    %v407 = vsub.f32 %v386, %v403
    %v408 = vmul.f32 %v404, 1.442695
    %v409 = vpow.pop %v408
    %v410 = vmul.f32 %v405, 1.442695
    %v411 = vpow.pop %v410
    %v412 = vmul.f32 %v406, 1.442695
    %v413 = vpow.pop %v412
    %v414 = vmul.f32 %v407, 1.442695
    %v415 = vpow.pop %v414
    %v416 = vsel %vm391, %v409, 0.0
    %417 = vadd.xlane.f32.xlu0 %v416
    %v418 = vpop.xlane.xlu0 %417
    %v419 = vsel %vm391, %v411, 0.0
    %420 = vadd.xlane.f32.xlu0 %v419
    %v421 = vpop.xlane.xlu0 %420
    %v422 = vsel %vm391, %v413, 0.0
    %423 = vadd.xlane.f32.xlu0 %v422
    %v424 = vpop.xlane.xlu0 %423
    %v425 = vsel %vm391, %v415, 0.0
    %426 = vadd.xlane.f32.xlu0 %v425
    %v427 = vpop.xlane.xlu0 %426
    %v428 = vrcp.pop %v418
    %v429 = vmul.f32 1.0, %v428
    %v430 = vrcp.pop %v421
    %v431 = vmul.f32 1.0, %v430
    %v432 = vrcp.pop %v424
    %v433 = vmul.f32 1.0, %v432
    %v434 = vrcp.pop %v427
    %v435 = vmul.f32 1.0, %v434
    %v436 = vmul.f32 %v409, %v429
    %v437 = vmul.f32 %v411, %v431
    %v438 = vmul.f32 %v413, %v433
    %v439 = vmul.f32 %v415, %v435
    %v440 = vpack.c.bf16 %v436, %v436
    %v441 = vpack.c.bf16 %v437, %v437
    %v442 = vpack.c.bf16 %v438, %v438
    %v443 = vpack.c.bf16 %v439, %v439
    %v445 = vsel %vm391, %v440, 0
    %vm447 = vcmask 1043456
    %v449 = vsel %vm447, %v227, 0
    %451 = vmatprep.subr.bf16.mxu0 0
    %452 = vmatpush1.bf16.msra.mxu0 %v449
    %453 = vmatprep.subr.bf16.mxu0 0
    %454 = vmatpush1.bf16.msra.mxu0 0
    %455 = vmatprep.subr.bf16.mxu0 0
    %456 = vmatpush1.bf16.msra.mxu0 0
    %457 = vmatprep.subr.bf16.mxu0 0
    %458 = vmatpush1.bf16.msra.mxu0 0
    %459 = vmatprep.subr.bf16.mxu0 0
    %460 = vmatpush1.bf16.msra.mxu0 0
    %461 = vmatprep.subr.bf16.mxu0 0
    %462 = vmatpush1.bf16.msra.mxu0 0
    %463 = vmatprep.subr.bf16.mxu0 0
    %464 = vmatpush1.bf16.msra.mxu0 0
    %465 = vmatprep.subr.bf16.mxu0 0
    %466 = vmatpush1.bf16.msra.mxu0 0
    %467 = vmatprep.subr.bf16.mxu0 0
    %468 = vmatpush1.bf16.msra.mxu0 0
    %469 = vmatprep.subr.bf16.mxu0 0
    %470 = vmatpush1.bf16.msra.mxu0 0
    %471 = vmatprep.subr.bf16.mxu0 0
    %472 = vmatpush1.bf16.msra.mxu0 0
    %473 = vmatprep.subr.bf16.mxu0 0
    %474 = vmatpush1.bf16.msra.mxu0 0
    %475 = vmatprep.subr.bf16.mxu0 0
    %476 = vmatpush1.bf16.msra.mxu0 0
    %477 = vmatprep.subr.bf16.mxu0 0
    %478 = vmatpush1.bf16.msra.mxu0 0
    %479 = vmatprep.subr.bf16.mxu0 0
    %480 = vmatpush1.bf16.msra.mxu0 0
    %481 = vmatprep.subr.bf16.mxu0 0
    %482 = vmatpush1.bf16.msra.mxu0 0
    %483 = vmatprep.mubr.bf16.mxu0 0
    %484 = vmatmul.mubr.bf16.gmra.mrb[0].mxu0 %v445
    %v485 = vpop.f32.mrb[0].mxu0
    %v486 = vadd.f32 0.0, %v485
    %v487 = vpop.f32.mrb[0].mxu0
    %v488 = vpop.f32.mrb[0].mxu0
    %v489 = vpop.f32.mrb[0].mxu0
    %490 = vdwg.mxu0
    %v492 = vsel %vm391, %v441, 0
    %v495 = vsel %vm447, %v228, 0
    %497 = vmatprep.subr.bf16.mxu0 0
    %498 = vmatpush1.bf16.msra.mxu0 %v495
    %499 = vmatprep.subr.bf16.mxu0 0
    %500 = vmatpush1.bf16.msra.mxu0 0
    %501 = vmatprep.subr.bf16.mxu0 0
    %502 = vmatpush1.bf16.msra.mxu0 0
    %503 = vmatprep.subr.bf16.mxu0 0
    %504 = vmatpush1.bf16.msra.mxu0 0
    %505 = vmatprep.subr.bf16.mxu0 0
    %506 = vmatpush1.bf16.msra.mxu0 0
    %507 = vmatprep.subr.bf16.mxu0 0
    %508 = vmatpush1.bf16.msra.mxu0 0
    %509 = vmatprep.subr.bf16.mxu0 0
    %510 = vmatpush1.bf16.msra.mxu0 0
    %511 = vmatprep.subr.bf16.mxu0 0
    %512 = vmatpush1.bf16.msra.mxu0 0
    %513 = vmatprep.subr.bf16.mxu0 0
    %514 = vmatpush1.bf16.msra.mxu0 0
    %515 = vmatprep.subr.bf16.mxu0 0
    %516 = vmatpush1.bf16.msra.mxu0 0
    %517 = vmatprep.subr.bf16.mxu0 0
    %518 = vmatpush1.bf16.msra.mxu0 0
    %519 = vmatprep.subr.bf16.mxu0 0
    %520 = vmatpush1.bf16.msra.mxu0 0
    %521 = vmatprep.subr.bf16.mxu0 0
    %522 = vmatpush1.bf16.msra.mxu0 0
    %523 = vmatprep.subr.bf16.mxu0 0
    %524 = vmatpush1.bf16.msra.mxu0 0
    %525 = vmatprep.subr.bf16.mxu0 0
    %526 = vmatpush1.bf16.msra.mxu0 0
    %527 = vmatprep.subr.bf16.mxu0 0
    %528 = vmatpush1.bf16.msra.mxu0 0
    %529 = vmatprep.mubr.bf16.mxu0 0
    %530 = vmatmul.mubr.bf16.gmra.mrb[0].mxu0 %v492
    %v531 = vpop.f32.mrb[0].mxu0
    %v532 = vadd.f32 0.0, %v531
    %v533 = vpop.f32.mrb[0].mxu0
    %v534 = vpop.f32.mrb[0].mxu0
    %v535 = vpop.f32.mrb[0].mxu0
    %536 = vdwg.mxu0
    %v538 = vsel %vm391, %v442, 0
    %v541 = vsel %vm447, %v229, 0
    %543 = vmatprep.subr.bf16.mxu0 0
    %544 = vmatpush1.bf16.msra.mxu0 %v541
    %545 = vmatprep.subr.bf16.mxu0 0
    %546 = vmatpush1.bf16.msra.mxu0 0
    %547 = vmatprep.subr.bf16.mxu0 0
    %548 = vmatpush1.bf16.msra.mxu0 0
    %549 = vmatprep.subr.bf16.mxu0 0
    %550 = vmatpush1.bf16.msra.mxu0 0
    %551 = vmatprep.subr.bf16.mxu0 0
    %552 = vmatpush1.bf16.msra.mxu0 0
    %553 = vmatprep.subr.bf16.mxu0 0
    %554 = vmatpush1.bf16.msra.mxu0 0
    %555 = vmatprep.subr.bf16.mxu0 0
    %556 = vmatpush1.bf16.msra.mxu0 0
    %557 = vmatprep.subr.bf16.mxu0 0
    %558 = vmatpush1.bf16.msra.mxu0 0
    %559 = vmatprep.subr.bf16.mxu0 0
    %560 = vmatpush1.bf16.msra.mxu0 0
    %561 = vmatprep.subr.bf16.mxu0 0
    %562 = vmatpush1.bf16.msra.mxu0 0
    %563 = vmatprep.subr.bf16.mxu0 0
    %564 = vmatpush1.bf16.msra.mxu0 0
    %565 = vmatprep.subr.bf16.mxu0 0
    %566 = vmatpush1.bf16.msra.mxu0 0
    %567 = vmatprep.subr.bf16.mxu0 0
    %568 = vmatpush1.bf16.msra.mxu0 0
    %569 = vmatprep.subr.bf16.mxu0 0
    %570 = vmatpush1.bf16.msra.mxu0 0
    %571 = vmatprep.subr.bf16.mxu0 0
    %572 = vmatpush1.bf16.msra.mxu0 0
    %573 = vmatprep.subr.bf16.mxu0 0
    %574 = vmatpush1.bf16.msra.mxu0 0
    %575 = vmatprep.mubr.bf16.mxu0 0
    %576 = vmatmul.mubr.bf16.gmra.mrb[0].mxu0 %v538
    %v577 = vpop.f32.mrb[0].mxu0
    %v578 = vadd.f32 0.0, %v577
    %v579 = vpop.f32.mrb[0].mxu0
    %v580 = vpop.f32.mrb[0].mxu0
    %v581 = vpop.f32.mrb[0].mxu0
    %582 = vdwg.mxu0
    %v584 = vsel %vm391, %v443, 0
    %v587 = vsel %vm447, %v230, 0
    %589 = vmatprep.subr.bf16.mxu0 0
    %590 = vmatpush1.bf16.msra.mxu0 %v587
    %591 = vmatprep.subr.bf16.mxu0 0
    %592 = vmatpush1.bf16.msra.mxu0 0
    %593 = vmatprep.subr.bf16.mxu0 0
    %594 = vmatpush1.bf16.msra.mxu0 0
    %595 = vmatprep.subr.bf16.mxu0 0
    %596 = vmatpush1.bf16.msra.mxu0 0
    %597 = vmatprep.subr.bf16.mxu0 0
    %598 = vmatpush1.bf16.msra.mxu0 0
    %599 = vmatprep.subr.bf16.mxu0 0
    %600 = vmatpush1.bf16.msra.mxu0 0
    %601 = vmatprep.subr.bf16.mxu0 0
    %602 = vmatpush1.bf16.msra.mxu0 0
    %603 = vmatprep.subr.bf16.mxu0 0
    %604 = vmatpush1.bf16.msra.mxu0 0
    %605 = vmatprep.subr.bf16.mxu0 0
    %606 = vmatpush1.bf16.msra.mxu0 0
    %607 = vmatprep.subr.bf16.mxu0 0
    %608 = vmatpush1.bf16.msra.mxu0 0
    %609 = vmatprep.subr.bf16.mxu0 0
    %610 = vmatpush1.bf16.msra.mxu0 0
    %611 = vmatprep.subr.bf16.mxu0 0
    %612 = vmatpush1.bf16.msra.mxu0 0
    %613 = vmatprep.subr.bf16.mxu0 0
    %614 = vmatpush1.bf16.msra.mxu0 0
    %615 = vmatprep.subr.bf16.mxu0 0
    %616 = vmatpush1.bf16.msra.mxu0 0
    %617 = vmatprep.subr.bf16.mxu0 0
    %618 = vmatpush1.bf16.msra.mxu0 0
    %619 = vmatprep.subr.bf16.mxu0 0
    %620 = vmatpush1.bf16.msra.mxu0 0
    %621 = vmatprep.mubr.bf16.mxu0 0
    %622 = vmatmul.mubr.bf16.gmra.mrb[0].mxu0 %v584
    %v623 = vpop.f32.mrb[0].mxu0
    %v624 = vadd.f32 0.0, %v623
    %v625 = vpop.f32.mrb[0].mxu0
    %v626 = vpop.f32.mrb[0].mxu0
    %v627 = vpop.f32.mrb[0].mxu0
    %628 = vdwg.mxu0
    %629 = vst [vmem:[#allocation7] sm:$0xff] %v486
    %630 = vst [vmem:[#allocation7 + $0x8] sm:$0xff] %v532
    %631 = vst [vmem:[#allocation7 + $0x10] sm:$0xff] %v578
    %632 = vst [vmem:[#allocation7 + $0x18] sm:$0xff] %v624
    %633 = vst.msk [vmem:[#allocation8] sm:$0xff] %vm391, %v436
    %634 = vst.msk [vmem:[#allocation8 + $0x8] sm:$0xff] %vm391, %v437
    %635 = vst.msk [vmem:[#allocation8 + $0x10] sm:$0xff] %vm391, %v438
    %636 = vst.msk [vmem:[#allocation8 + $0x18] sm:$0xff] %vm391, %v439
    // Predicated region
    $region22: #{tpu_custom_call.1} parent=1 // pred_check
      _
    $region23: #{tpu_custom_call.1} parent=1 // pred_check_branch
      %638 = sbr.rel (0) target = $region25
    $region24: #{tpu_custom_call.1} parent=1 // pred_region
      %s640 = ssub.s32 512, 512
      %641 = vsyncadd [#allocation4], %s640
      %s642 = sshll.u32 [#allocation7], 4
      %s643 = int_to_ptr.vmem [resolvable:$true] %s642
      %648 = dma.vmem_to_hbm [thread:$0]  %s643, 512, %s3, [#allocation4], 128, 128, 8
    $region25: #{tpu_custom_call.1} parent=1 // pred_fallthru
      _
    // Predicated region
    $region26: #{tpu_custom_call.1} parent=1 // pred_check
      _
    $region27: #{tpu_custom_call.1} parent=1 // pred_check_branch
      %650 = sbr.rel (0) target = $region29
    $region28: #{tpu_custom_call.1} parent=1 // pred_region
      %s652 = ssub.s32 512, 512
      %653 = vsyncadd [#allocation9], %s652
      %s654 = sshll.u32 [#allocation8], 4
      %s655 = int_to_ptr.vmem [resolvable:$true] %s654
      %660 = dma.vmem_to_hbm [thread:$0]  %s655, 512, %s4, [#allocation9], 128, 128, 8
    $region29: #{tpu_custom_call.1} parent=1 // pred_fallthru
      _
    // Predicated region
    $region30: #{tpu_custom_call.1} parent=1 // pred_check
      _
    $region31: #{tpu_custom_call.1} parent=1 // pred_check_branch
      %662 = sbr.rel (0) target = $region33
    $region32: #{tpu_custom_call.1} parent=1 // pred_region
      %663 = dma.done [#allocation4], 512
    $region33: #{tpu_custom_call.1} parent=1 // pred_fallthru
      _
    // Predicated region
    $region34: #{tpu_custom_call.1} parent=1 // pred_check
      _
    $region35: #{tpu_custom_call.1} parent=1 // pred_check_branch
      %665 = sbr.rel (0) target = $region37
    $region36: #{tpu_custom_call.1} parent=1 // pred_region
      %666 = dma.done [#allocation9], 512
    $region37: #{tpu_custom_call.1} parent=1 // pred_fallthru
      _
    %667 = vsyncpa [#allocation3], 1
    %668 = vsyncpa [#allocation6], 1
    %669 = vsyncpa [#allocation4], 1
    %670 = vsyncpa [#allocation9], 1

</llo_original>
